<compile_context>
chip_gen: v6e
topology: v6e:2x2x1
jax: 0.10.0
libtpu: 0.0.40
codegen_flags: <defaults>
</compile_context>

<pallas_src>
import functools
import math

import jax
import jax.numpy as jnp
from jax.experimental import pallas as pl
from jax.experimental.pallas import tpu as pltpu


def _linear_bias_kernel(x_ref, w_ref, b_ref, o_ref, *, compute_dtype):
    # x_ref: (tm, Kk) native dtype, w_ref: (Kk, tn) bf16, b_ref: (1, tn) f32,
    # o_ref: (tm, tn) out dtype.  Cast x in-kernel (VPU cast hides under DMA).
    acc = jnp.dot(x_ref[...].astype(compute_dtype), w_ref[...],
                  preferred_element_type=jnp.float32)
    o_ref[...] = (acc + b_ref[...]).astype(o_ref.dtype)


_TM_CANDIDATES = (2048, 1024, 512, 256, 128, 64, 32, 16, 8)
_TN_CANDIDATES = (4096, 2048, 1024, 512, 256, 128)


def _pick_tiles(Mk, Kk, Nk, x_bytes, w_bytes, out_bytes, budget):
    """Choose (tm, tn, single_buffer_weight) under the VMEM budget."""
    # --- N axis: keep the whole weight resident if it fits in ~half budget. ---
    w_resident = Kk * Nk * w_bytes + Nk * 4
    if w_resident <= budget // 2:
        tn = Nk
        # Single-buffer the constant weight/bias only when it actually saves
        # meaningful VMEM (keeps the small-shape lowering maximally plain).
        single_buf_w = w_resident >= (2 << 20)
        w_bufs = 1 if single_buf_w else 2
    else:
        single_buf_w = False
        w_bufs = 2
        tn = None
        for c in _TN_CANDIDATES:
            if Nk % c == 0 and w_bufs * (Kk * c * w_bytes + c * 4) <= budget // 2:
                tn = c
                break
        if tn is None:
            tn = Nk  # extreme / oddly-shaped C: rely on vmem_limit as-is

    # --- M axis ---
    def needed(t):
        return (2 * t * Kk * x_bytes            # double-buffered x tile
                + 2 * t * tn * out_bytes        # double-buffered out tile
                + w_bufs * (Kk * tn * w_bytes + tn * 4))

    cands = [t for t in _TM_CANDIDATES if needed(t) <= budget] or [8]
    cdiv = lambda a, b: -(-a // b)

    for t in cands:  # exact divisor, >=4 steps, even step count (v7x megacore)
        s = Mk // t
        if Mk % t == 0 and s >= 4 and s % 2 == 0:
            return t, tn, single_buf_w
    for t in cands:  # exact divisor, >=4 steps
        if Mk % t == 0 and Mk // t >= 4:
            return t, tn, single_buf_w
    for t in cands:  # exact divisor, >=2 steps
        if Mk % t == 0 and Mk // t >= 2:
            return t, tn, single_buf_w
    for t in cands:  # padded grid, >=4 steps, <=12.5% padding waste
        s = cdiv(Mk, t)
        if s >= 4 and s * t - Mk <= max(Mk // 8, 8):
            return t, tn, single_buf_w
    for t in reversed(cands):  # otherwise minimize padding with the smallest tile
        if cdiv(Mk, t) >= 2:
            return t, tn, single_buf_w
    return cands[-1], tn, single_buf_w


def _patch_merging_impl(x, wt, b, *, compute_dtype=jnp.bfloat16, out_dtype=None):
    """x: (BS, L, C); wt: (4C, 2C) already transposed+cast; b: (2C,) float32."""
    BS, L, C = x.shape
    H = int(math.sqrt(L))
    assert H * H == L and H % 2 == 0, "L must be the square of an even H"
    K, N = 4 * C, 2 * C
    assert wt.shape == (K, N) and b.shape == (N,)

    out_dtype = x.dtype if out_dtype is None else out_dtype
    M = BS * (H // 2) * (H // 2)

    # Contiguous regrouping, identical to torch .view on a contiguous tensor.
    x2 = x.reshape(M, K)                       # native dtype; cast happens in-kernel
    wk = wt.astype(compute_dtype)
    bk = b.astype(jnp.float32).reshape(1, N)

    # Lane-dense output folding: process f rows at a time through a
    # block-diagonal weight so every output block is an unmasked multiple of
    # 128 lanes.  Exact: the off-diagonal zero blocks add nothing to the acc.
    f = 1
    if N % 128 != 0:
        fc = math.lcm(N, 128) // N
        if fc * N <= 1024:                     # cap the fold factor
            f = fc
    if f > 1:
        wk = jnp.kron(jnp.eye(f, dtype=wk.dtype), wk)   # (f*K, f*N) block-diag
        bk = jnp.tile(bk, (1, f))                        # (1, f*N)
    Kk, Nk = f * K, f * N

    x_bytes = jnp.dtype(x.dtype).itemsize
    w_bytes = jnp.dtype(compute_dtype).itemsize
    out_bytes = jnp.dtype(out_dtype).itemsize

    # Generation-aware VMEM budget: ~48 MiB on v7x (64 MiB physical/TC),
    # ~96 MiB on v5e/v6e (128 MiB physical).
    try:
        vmem_cap = int(pltpu.get_tpu_info().vmem_capacity_bytes)
    except Exception:
        vmem_cap = 64 << 20
    vmem_limit = int(min(vmem_cap * 3 // 4, 100 << 20))
    pick_budget = max(vmem_limit - (4 << 20), 16 << 20)

    Mk = -(-M // f)
    tm, tn, single_buf_w = _pick_tiles(Mk, Kk, Nk, x_bytes, w_bytes,
                                       out_bytes, pick_budget)
    Mk_pad = -(-Mk // tm) * tm
    M_pad = Mk_pad * f
    if M_pad != M:                      # awkward M: pad rows instead of a giant block
        x2 = jnp.pad(x2, ((0, M_pad - M), (0, 0)))
    x2 = x2.reshape(Mk_pad, Kk)

    nj, ni = Nk // tn, Mk_pad // tm     # j (N tiles) outer: weight fetched once per tile

    w_spec_kwargs = dict(pipeline_mode=pl.Buffered(1)) if single_buf_w else {}
    grid_spec = pltpu.PrefetchScalarGridSpec(
        num_scalar_prefetch=0,
        grid=(nj, ni),
        in_specs=[
            pl.BlockSpec((tm, Kk), lambda j, i: (i, 0)),
            pl.BlockSpec((Kk, tn), lambda j, i: (0, j), **w_spec_kwargs),
            pl.BlockSpec((1, tn), lambda j, i: (0, j), **w_spec_kwargs),
        ],
        out_specs=pl.BlockSpec((tm, tn), lambda j, i: (i, j)),
    )

    out2 = pl.pallas_call(
        functools.partial(_linear_bias_kernel, compute_dtype=compute_dtype),
        out_shape=jax.ShapeDtypeStruct((Mk_pad, Nk), out_dtype),
        grid_spec=grid_spec,
        compiler_params=pltpu.CompilerParams(
            dimension_semantics=("parallel", "parallel"),
            vmem_limit_bytes=vmem_limit,
        ),
        cost_estimate=pl.CostEstimate(
            flops=2 * M * K * N,                       # real work (fold removed)
            transcendentals=0,
            bytes_accessed=(M * K * x_bytes            # x at its native dtype
                            + Kk * Nk * w_bytes        # weight once
                            + M * N * out_bytes),      # output at out_dtype
        ),
    )(x2, wk, bk)

    out = out2.reshape(M_pad, N)
    if M_pad != M:
        out = out[:M]
    return out.reshape(BS, (H // 2) * (H // 2), N)


def make_patch_merging(weight, bias, *, compute_dtype=jnp.bfloat16, out_dtype=None):
    """weight: (2C, 4C) torch-Linear layout; bias: (2C,).

    Hoists per-weight prep (transpose + bf16 cast) out of the per-call path
    and returns a jitted forward pass.  `out_dtype=jnp.bfloat16` halves the
    writeback traffic if the consumer tolerates bf16 activations."""
    wt = jnp.asarray(weight).T.astype(compute_dtype)   # (4C, 2C), done once
    b = jnp.asarray(bias).astype(jnp.float32)

    @jax.jit
    def fwd(x):
        return _patch_merging_impl(x, wt, b, compute_dtype=compute_dtype,
                                   out_dtype=out_dtype)

    return fwd


def patch_merging(x, weight, bias, *, compute_dtype=jnp.bfloat16, out_dtype=None):
    """One-shot convenience wrapper (prefer make_patch_merging for reuse)."""
    return _patch_merging_impl(
        x,
        jnp.asarray(weight).T.astype(compute_dtype),
        jnp.asarray(bias).astype(jnp.float32),
        compute_dtype=compute_dtype,
        out_dtype=out_dtype,
    )


if __name__ == "__main__":
    # Small shapes consistent with the module: BS=2, C=32, H=16 -> L=256.
    BS, C, H = 2, 32, 16
    L = H * H

    key = jax.random.PRNGKey(0)
    kx, kw, kb = jax.random.split(key, 3)

    x = jax.random.normal(kx, (BS, L, C), dtype=jnp.float32)

    # Deterministic Linear(4C -> 2C) init (PyTorch-style uniform +-1/sqrt(fan_in)).
    fan_in = 4 * C
    bound = 1.0 / math.sqrt(fan_in)
    weight = jax.random.uniform(kw, (2 * C, 4 * C), jnp.float32, -bound, bound)
    bias = jax.random.uniform(kb, (2 * C,), jnp.float32, -bound, bound)

    fwd = make_patch_merging(weight, bias)
    out = jax.block_until_ready(fwd(x))

    # Reference in plain JAX with the same bf16 input/weight quantization
    # (accumulation stays f32 in both, so this isolates kernel correctness).
    xq = x.astype(jnp.bfloat16).astype(jnp.float32)
    wq = weight.astype(jnp.bfloat16).astype(jnp.float32)
    ref = (xq.reshape(BS, H // 2, H // 2, 4 * C) @ wq.T + bias).reshape(
        BS, -1, 2 * C)

    assert out.shape == (BS, L // 4, 2 * C)
    assert out.dtype == x.dtype
    assert jnp.allclose(out, ref, atol=1e-2, rtol=1e-2), \
        float(jnp.abs(out - ref).max())

    print("KERNEL_OK")
</pallas_src>

<mosaic_0001>
module attributes {stable_mosaic.version = 11 : i64} {
  func.func @_linear_bias_kernel(%arg0: i32, %arg1: i32, %arg2: memref<16x256xf32, #tpu.memory_space<vmem>>, %arg3: memref<256x128xbf16, #tpu.memory_space<vmem>>, %arg4: memref<1x128xf32, #tpu.memory_space<vmem>>, %arg5: memref<16x128xf32, #tpu.memory_space<vmem>>) attributes {dimension_semantics = [#tpu.dimension_semantics<parallel>, #tpu.dimension_semantics<parallel>], iteration_bounds = array<i64: 1, 4>, scalar_prefetch = 0 : i64, scratch_operands = 0 : i64, tpu.core_type = #tpu.core_type<tc>, window_params = [{transform_indices = @transform_0, window_bounds = array<i64: 16, 256>}, {transform_indices = @transform_1, window_bounds = array<i64: 256, 128>}, {transform_indices = @transform_2, window_bounds = array<i64: 1, 128>}, {transform_indices = @transform_3, window_bounds = array<i64: 16, 128>}]} {
    %c0 = arith.constant 0 : index
    %c0_0 = arith.constant 0 : index
    %0 = vector.load %arg2[%c0, %c0_0] : memref<16x256xf32, #tpu.memory_space<vmem>>, vector<16x256xf32>
    %1 = arith.truncf %0 : vector<16x256xf32> to vector<16x256xbf16>
    %c0_1 = arith.constant 0 : index
    %c0_2 = arith.constant 0 : index
    %2 = vector.load %arg3[%c0_1, %c0_2] : memref<256x128xbf16, #tpu.memory_space<vmem>>, vector<256x128xbf16>
    %cst = arith.constant dense<0.000000e+00> : vector<16x128xf32>
    %3 = tpu.matmul %1, %2, %cst {dimension_numbers = #tpu.dot_dimension_numbers<[1], [0], [0], [1], [0, 0, 1, 1], [], []>} : vector<16x256xbf16>, vector<256x128xbf16>, vector<16x128xf32> -> vector<16x128xf32>
    %c0_3 = arith.constant 0 : index
    %c0_4 = arith.constant 0 : index
    %4 = vector.load %arg4[%c0_3, %c0_4] : memref<1x128xf32, #tpu.memory_space<vmem>>, vector<1x128xf32>
    %5 = vector.broadcast %4 : vector<1x128xf32> to vector<16x128xf32>
    %6 = arith.addf %3, %5 : vector<16x128xf32>
    %c0_5 = arith.constant 0 : index
    %c0_6 = arith.constant 0 : index
    %7 = vector.load %arg5[%c0_5, %c0_6] : memref<16x128xf32, #tpu.memory_space<vmem>>, vector<16x128xf32>
    tpu.vector_store %arg5[%c0_5, %c0_6], %6 {strides = array<i32>} : memref<16x128xf32, #tpu.memory_space<vmem>>, vector<16x128xf32>,
    return
  }
  func.func @transform_0(%arg0: i32, %arg1: i32) -> (i32, i32) {
    %c0_i32 = arith.constant 0 : i32
    %c0_i32_0 = arith.constant 0 : i32
    return %arg1, %c0_i32 : i32, i32
  }
  func.func @transform_1(%arg0: i32, %arg1: i32) -> (i32, i32) {
    %c0_i32 = arith.constant 0 : i32
    %c0_i32_0 = arith.constant 0 : i32
    return %c0_i32, %arg0 : i32, i32
  }
  func.func @transform_2(%arg0: i32, %arg1: i32) -> (i32, i32) {
    %c0_i32 = arith.constant 0 : i32
    %c0_i32_0 = arith.constant 0 : i32
    return %c0_i32, %arg0 : i32, i32
  }
  func.func @transform_3(%arg0: i32, %arg1: i32) -> (i32, i32) {
    %c0_i32 = arith.constant 0 : i32
    return %arg1, %arg0 : i32, i32
  }
}

</mosaic_0001>

<llo_original>
// kernel: fwd.1
$region0: #{fwd.1}
  #allocation0 [shape = 'u32[]', space=smem, size = 0x4, offset = 0x4, fixed_abs, tag = 'smem constant byte address 0x4 - core index']
  #allocation1 [shape = 'u32[144,128]{1,0:T(1,128)}', space=vmem, size = 0x12000, scoped, tag = 'internal scratch']
  %s0 = inlined_call_operand.vmem [shape: f32[64,256], index: 0, kind: input, shape index: {}]
  %s1 = inlined_call_operand.vmem [shape: bf16[256,128], index: 1, kind: input, shape index: {}]
  %s2 = inlined_call_operand.vmem [shape: f32[1,128], index: 2, kind: input, shape index: {}]
  %s3 = inlined_call_operand.vmem [shape: f32[64,128], index: 3, kind: output, shape index: {}]
  %s4 = sld [smem:[#allocation0]]
  $region45: #{fwd.1} parent=0
    _
  %s6 = ssub.s32 1, %s4
  %s7 = scalar_select 0, %s6, %s4
  loop: start=0, step=1, limit=6
  $region2: #{fwd.1} parent=0 // loop_pre_header
    _
  $region3: #{fwd.1} parent=0 // loop_header
    %s9 = sphi 0, %s13
    %p10 = scmp.ge.s32.totalorder %s9, 6
    %s16 = sphi 0, %s28
    %s17 = sphi 0, %s24
    %s18 = sphi 0, %s16
    %s19 = sphi 0, %s17
    %s20 = sphi 0, %s18
    %s21 = sphi 0, %s19
    %s31 = sphi 0, %s33
    %s34 = sphi 0, %s31
    %s35 = sphi 0, %s34
    %s51 = sphi 0, %s35
    %s57 = sphi 0, %s59
    %s60 = sphi 0, %s57
    %s61 = sphi 0, %s60
    %s77 = sphi 0, %s61
    %s83 = sphi 0, %s85
    %s86 = sphi 0, %s83
    %s87 = sphi 0, %s86
    %s103 = sphi 0, %s87
    %s111 = sphi 0, %s113
    %s114 = sphi 0, %s111
    %s115 = sphi 0, %s114
    %s131 = sphi 0, %s115
  $region4: #{fwd.1} parent=0 // loop_header_branch
    %12 = sbr.rel (%p10) target = $region8
  $region5: #{fwd.1} parent=0 // loop_body
    %s14 = ssub.s32 %s9, 1
    %s15 = ssub.s32 %s9, 2
    %s22 = sadd.s32 1, %s17
    %p23 = scmp.ge.s32.totalorder %s22, 4
    %s24 = scalar_select %p23, 0, %s22
    %s25 = sadd.s32 1, %s16
    %s26 = scalar_select %p23, %s25, %s16
    %p27 = scmp.ge.s32.totalorder %s26, 1
    %s28 = scalar_select %p27, 0, %s26
    %s29 = ssub.s32 %s17, %s24
    %p30 = scmp.eq.s32.totalorder %s29, 0
    %s32 = sadd.s32 %s31, 1
    %s33 = scalar_select %p30, %s31, %s32
    %p36 = pneg %p30
    %p37 = scmp.eq.s32.totalorder %s9, 3
    %p38 = por %p36, %p37
    %p39 = scmp.ne.s32.totalorder %s31, %s34
    %p40 = scmp.eq.s32.totalorder %s9, 0
    %p41 = por %p39, %p40
    %p42 = scmp.ne.s32.totalorder %s31, %s34
    %p43 = scmp.eq.s32.totalorder %s14, 3
    %p44 = por %p42, %p43
    %p45 = scmp.ne.s32.totalorder %s34, %s35
    %p46 = scmp.eq.s32.totalorder %s14, 0
    %p47 = por %p45, %p46
    %p48 = scmp.ne.s32.totalorder %s34, %s35
    %p49 = scmp.eq.s32.totalorder %s15, 3
    %p50 = por %p48, %p49
    %p52 = scmp.ne.s32.totalorder %s35, %s51
    %p53 = scmp.eq.s32.totalorder %s15, 0
    %p54 = por %p52, %p53
    %s55 = ssub.s32 %s16, %s28
    %p56 = scmp.eq.s32.totalorder %s55, 0
    %s58 = sadd.s32 %s57, 1
    %s59 = scalar_select %p56, %s57, %s58
    %p62 = pneg %p56
    %p63 = scmp.eq.s32.totalorder %s9, 3
    %p64 = por %p62, %p63
    %p65 = scmp.ne.s32.totalorder %s57, %s60
    %p66 = scmp.eq.s32.totalorder %s9, 0
    %p67 = por %p65, %p66
    %p68 = scmp.ne.s32.totalorder %s57, %s60
    %p69 = scmp.eq.s32.totalorder %s14, 3
    %p70 = por %p68, %p69
    %p71 = scmp.ne.s32.totalorder %s60, %s61
    %p72 = scmp.eq.s32.totalorder %s14, 0
    %p73 = por %p71, %p72
    %p74 = scmp.ne.s32.totalorder %s60, %s61
    %p75 = scmp.eq.s32.totalorder %s15, 3
    %p76 = por %p74, %p75
    %p78 = scmp.ne.s32.totalorder %s61, %s77
    %p79 = scmp.eq.s32.totalorder %s15, 0
    %p80 = por %p78, %p79
    %s81 = ssub.s32 %s16, %s28
    %p82 = scmp.eq.s32.totalorder %s81, 0
    %s84 = sadd.s32 %s83, 1
    %s85 = scalar_select %p82, %s83, %s84
    %p88 = pneg %p82
    %p89 = scmp.eq.s32.totalorder %s9, 3
    %p90 = por %p88, %p89
    %p91 = scmp.ne.s32.totalorder %s83, %s86
    %p92 = scmp.eq.s32.totalorder %s9, 0
    %p93 = por %p91, %p92
    %p94 = scmp.ne.s32.totalorder %s83, %s86
    %p95 = scmp.eq.s32.totalorder %s14, 3
    %p96 = por %p94, %p95
    %p97 = scmp.ne.s32.totalorder %s86, %s87
    %p98 = scmp.eq.s32.totalorder %s14, 0
    %p99 = por %p97, %p98
    %p100 = scmp.ne.s32.totalorder %s86, %s87
    %p101 = scmp.eq.s32.totalorder %s15, 3
    %p102 = por %p100, %p101
    %p104 = scmp.ne.s32.totalorder %s87, %s103
    %p105 = scmp.eq.s32.totalorder %s15, 0
    %p106 = por %p104, %p105
    %s107 = ssub.s32 %s17, %s24
    %s108 = ssub.s32 %s16, %s28
    %s109 = sor.u32 %s107, %s108
    %p110 = scmp.eq.s32.totalorder %s109, 0
    %s112 = sadd.s32 %s111, 1
    %s113 = scalar_select %p110, %s111, %s112
    %p116 = pneg %p110
    %p117 = scmp.eq.s32.totalorder %s9, 3
    %p118 = por %p116, %p117
    %p119 = scmp.ne.s32.totalorder %s111, %s114
    %p120 = scmp.eq.s32.totalorder %s9, 0
    %p121 = por %p119, %p120
    %p122 = scmp.ne.s32.totalorder %s111, %s114
    %p123 = scmp.eq.s32.totalorder %s14, 3
    %p124 = por %p122, %p123
    %p125 = scmp.ne.s32.totalorder %s114, %s115
    %p126 = scmp.eq.s32.totalorder %s14, 0
    %p127 = por %p125, %p126
    %p128 = scmp.ne.s32.totalorder %s114, %s115
    %p129 = scmp.eq.s32.totalorder %s15, 3
    %p130 = por %p128, %p129
    %p132 = scmp.ne.s32.totalorder %s115, %s131
    %p133 = scmp.eq.s32.totalorder %s15, 0
    %p134 = por %p132, %p133
    %p135 = scmp.le.s32.totalorder 1, %s9
    %p136 = scmp.lt.s32.totalorder %s9, 5
    %p137 = pnand %p135, %p136
    %p138 = pneg %p137
    // Predicated region
    $region9: #{fwd.1} parent=5 // pred_check
      _
    $region10: #{fwd.1} parent=5 // pred_check_branch
      %140 = sbr.rel (%p137) target = $region12
    $region11: #{fwd.1} parent=5 // pred_region
      %s141 = ssub.s32 %s9, 1
      // Predicated region
      $region13: #{fwd.1} parent=11 // pred_check
        %p142 = pneg %p73
      $region14: #{fwd.1} parent=11 // pred_check_branch
        %144 = sbr.rel (%p142) target = $region16
      $region15: #{fwd.1} parent=11 // pred_region
        %p145 = scmp.lt.s32.totalorder %s18, 0
        %s146 = scalar_select %p145, %s18, 0
        %s147 = smul.addr %s146, 4
        %s148 = scalar_lea.vmem %s1, %s147
      $region16: #{fwd.1} parent=11 // pred_fallthru
        _
      // Predicated region
      $region17: #{fwd.1} parent=11 // pred_check
        %p149 = pneg %p99
      $region18: #{fwd.1} parent=11 // pred_check_branch
        %151 = sbr.rel (%p149) target = $region20
      $region19: #{fwd.1} parent=11 // pred_region
        %p152 = scmp.lt.s32.totalorder %s18, 0
        %s153 = scalar_select %p152, %s18, 0
        %s154 = scalar_lea.vmem %s2, %s153
      $region20: #{fwd.1} parent=11 // pred_fallthru
        _
    $region12: #{fwd.1} parent=5 // pred_fallthru
      _
    %p155 = scmp.lt.s32.totalorder %s9, 4
    // Predicated region
    $region21: #{fwd.1} parent=5 // pred_check
      %p156 = pneg %p155
    $region22: #{fwd.1} parent=5 // pred_check_branch
      %158 = sbr.rel (%p156) target = $region24
    $region23: #{fwd.1} parent=5 // pred_region
      // Predicated region
      $region25: #{fwd.1} parent=23 // pred_check
        %p159 = pneg %p41
      $region26: #{fwd.1} parent=23 // pred_check_branch
        %161 = sbr.rel (%p159) target = $region28
      $region27: #{fwd.1} parent=23 // pred_region
        %s162 = smul.u32 2, %s17
        %p163 = scmp.lt.s32.totalorder %s162, 7
        %s164 = scalar_select %p163, %s162, 7
        %s165 = smul.addr %s164, 2
        %s166 = smul.addr %s165, 8
        %s167 = scalar_lea.vmem %s0, %s166
        %s168 = smul.u32 2, %s17
      $region28: #{fwd.1} parent=23 // pred_fallthru
        _
    $region24: #{fwd.1} parent=5 // pred_fallthru
      _
    %p169 = scmp.le.s32.totalorder 1, %s9
    %p170 = scmp.lt.s32.totalorder %s9, 5
    %p171 = pnand %p169, %p170
    %p172 = pneg %p171
    // Predicated region
    $region29: #{fwd.1} parent=5 // pred_check
      _
    $region30: #{fwd.1} parent=5 // pred_check_branch
      %174 = sbr.rel (%p171) target = $region32
    $region31: #{fwd.1} parent=5 // pred_region
      %s175 = ssub.s32 %s9, 1
      %s176 = smul.u32 2, %s19
      %p177 = scmp.lt.s32.totalorder %s176, 7
      %s178 = scalar_select %p177, %s176, 7
      %s179 = smul.addr %s178, 2
      %s180 = smul.addr %s179, 8
      %s181 = scalar_lea.vmem %s0, %s180
      %p182 = pneg %p47
      %p183 = pneg %p44
      %p184 = scmp.lt.s32.totalorder %s18, 0
      %s185 = scalar_select %p184, %s18, 0
      %s186 = smul.addr %s185, 4
      %s187 = scalar_lea.vmem %s1, %s186
      %p188 = pneg %p73
      %p189 = pneg %p70
      %p190 = scmp.lt.s32.totalorder %s18, 0
      %s191 = scalar_select %p190, %s18, 0
      %s192 = scalar_lea.vmem %s2, %s191
      %p193 = pneg %p99
      %p194 = pneg %p96
      %p195 = pneg %p127
      %p196 = pneg %p124
      %s197 = smul.u32 2, %s19
      %p198 = scmp.lt.s32.totalorder %s197, 7
      %s199 = scalar_select %p198, %s197, 7
      %p200 = scmp.lt.s32.totalorder %s18, 0
      %s201 = scalar_select %p200, %s18, 0
      %s202 = sadd.s32 %s201, %s199
      %s203 = smul.addr %s202, 8
      %s204 = scalar_lea.vmem %s3, %s203
      %s205 = smul.u32 2, %s19
      %p206 = scmp.lt.s32.totalorder %s205, 7
      %s207 = scalar_select %p206, %s205, 7
      %s208 = smul.addr %s207, 2
      %s209 = smul.addr %s208, 8
      %s210 = scalar_lea.vmem %s0, %s209
      %s211 = smul.u32 2, %s19
      %p212 = scmp.lt.s32.totalorder %s18, 0
      %s213 = scalar_select %p212, %s18, 0
      %s214 = smul.addr %s213, 4
      %s215 = scalar_lea.vmem %s1, %s214
      %p216 = scmp.lt.s32.totalorder %s18, 0
      %s217 = scalar_select %p216, %s18, 0
      %s218 = scalar_lea.vmem %s2, %s217
      %s219 = smul.u32 2, %s19
      %p220 = scmp.lt.s32.totalorder %s219, 7
      %s221 = scalar_select %p220, %s219, 7
      %p222 = scmp.lt.s32.totalorder %s18, 0
      %s223 = scalar_select %p222, %s18, 0
      %s224 = sadd.s32 %s223, %s221
      %s225 = smul.addr %s224, 8
      %s226 = scalar_lea.vmem %s3, %s225
      %s227 = smul.u32 2, %s19
      %v229 = vld [vmem:[%s210] sm:$0xff]
      %v230 = vld [vmem:[%s210 + $0x8] sm:$0xff]
      %v231 = vld [vmem:[%s210 + $0x10] sm:$0xff]
      %v232 = vld [vmem:[%s210 + $0x18] sm:$0xff]
      %v233 = vpack.c.bf16 %v231, %v229
      %v234 = vpack.c.bf16 %v232, %v230
      %v235 = vld [vmem:[%s215] sm:$0xf]
      %v236 = vld [vmem:[%s215 + $0x4] sm:$0xf]
      %v237 = vld [vmem:[%s215 + $0x8] sm:$0xf]
      %v238 = vld [vmem:[%s215 + $0xc] sm:$0xf]
      %v239 = vld [vmem:[%s215 + $0x10] sm:$0xf]
      %v240 = vld [vmem:[%s215 + $0x14] sm:$0xf]
      %v241 = vld [vmem:[%s215 + $0x18] sm:$0xf]
      %v242 = vld [vmem:[%s215 + $0x1c] sm:$0xf]
      %v243 = vld [vmem:[%s215 + $0x20] sm:$0xf]
      %v244 = vld [vmem:[%s215 + $0x24] sm:$0xf]
      %v245 = vld [vmem:[%s215 + $0x28] sm:$0xf]
      %v246 = vld [vmem:[%s215 + $0x2c] sm:$0xf]
      %v247 = vld [vmem:[%s215 + $0x30] sm:$0xf]
      %v248 = vld [vmem:[%s215 + $0x34] sm:$0xf]
      %v249 = vld [vmem:[%s215 + $0x38] sm:$0xf]
      %v250 = vld [vmem:[%s215 + $0x3c] sm:$0xf]
      %v251 = vld [vmem:[%s215 + $0x40] sm:$0xf]
      %v252 = vld [vmem:[%s215 + $0x44] sm:$0xf]
      %v253 = vld [vmem:[%s215 + $0x48] sm:$0xf]
      %v254 = vld [vmem:[%s215 + $0x4c] sm:$0xf]
      %v255 = vld [vmem:[%s215 + $0x50] sm:$0xf]
      %v256 = vld [vmem:[%s215 + $0x54] sm:$0xf]
      %v257 = vld [vmem:[%s215 + $0x58] sm:$0xf]
      %v258 = vld [vmem:[%s215 + $0x5c] sm:$0xf]
      %v259 = vld [vmem:[%s215 + $0x60] sm:$0xf]
      %v260 = vld [vmem:[%s215 + $0x64] sm:$0xf]
      %v261 = vld [vmem:[%s215 + $0x68] sm:$0xf]
      %v262 = vld [vmem:[%s215 + $0x6c] sm:$0xf]
      %v263 = vld [vmem:[%s215 + $0x70] sm:$0xf]
      %v264 = vld [vmem:[%s215 + $0x74] sm:$0xf]
      %v265 = vld [vmem:[%s215 + $0x78] sm:$0xf]
      %v266 = vld [vmem:[%s215 + $0x7c] sm:$0xf]
      %v267 = vld [vmem:[%s218] sm:$0x1]
      %v269 = vlaneseq
      %v270 = vshrl.u32 %v269, 7
      %v271 = vsub.s32 0, %v270
      %v272 = vrot.slane %v267, %v271
      %v306 = vunpack.c.l.b16 %v235
      %v307 = vunpack.c.l.b16 %v236
      %v308 = vunpack.c.l.b16 %v237
      %v309 = vunpack.c.l.b16 %v238
      %v310 = vunpack.c.l.b16 %v239
      %v311 = vunpack.c.l.b16 %v240
      %v312 = vunpack.c.l.b16 %v241
      %v313 = vunpack.c.l.b16 %v242
      %v314 = vunpack.c.l.b16 %v243
      %v315 = vunpack.c.l.b16 %v244
      %v316 = vunpack.c.l.b16 %v245
      %v317 = vunpack.c.l.b16 %v246
      %v318 = vunpack.c.l.b16 %v247
      %v319 = vunpack.c.l.b16 %v248
      %v320 = vunpack.c.l.b16 %v249
      %v321 = vunpack.c.l.b16 %v250
      %v322 = vunpack.c.l.b16 %v251
      %v323 = vunpack.c.l.b16 %v252
      %v324 = vunpack.c.l.b16 %v253
      %v325 = vunpack.c.l.b16 %v254
      %v326 = vunpack.c.l.b16 %v255
      %v327 = vunpack.c.l.b16 %v256
      %v328 = vunpack.c.l.b16 %v257
      %v329 = vunpack.c.l.b16 %v258
      %v330 = vunpack.c.l.b16 %v259
      %v331 = vunpack.c.l.b16 %v260
      %v332 = vunpack.c.l.b16 %v261
      %v333 = vunpack.c.l.b16 %v262
      %v334 = vunpack.c.l.b16 %v263
      %v335 = vunpack.c.l.b16 %v264
      %v336 = vunpack.c.l.b16 %v265
      %v337 = vunpack.c.l.b16 %v266
      %v338 = vpack.c.b16 %v307, %v306
      %v339 = vpack.c.b16 %v309, %v308
      %v340 = vpack.c.b16 %v311, %v310
      %v341 = vpack.c.b16 %v313, %v312
      %v342 = vpack.c.b16 %v315, %v314
      %v343 = vpack.c.b16 %v317, %v316
      %v344 = vpack.c.b16 %v319, %v318
      %v345 = vpack.c.b16 %v321, %v320
      %v346 = vpack.c.b16 %v323, %v322
      %v347 = vpack.c.b16 %v325, %v324
      %v348 = vpack.c.b16 %v327, %v326
      %v349 = vpack.c.b16 %v329, %v328
      %v350 = vpack.c.b16 %v331, %v330
      %v351 = vpack.c.b16 %v333, %v332
      %v352 = vpack.c.b16 %v335, %v334
      %v353 = vpack.c.b16 %v337, %v336
      %370 = vmatprep.subr.bf16.mxu0 0
      %371 = vmatpush1.bf16.msra.mxu0 %v345
      %372 = vmatprep.subr.bf16.mxu0 0
      %373 = vmatpush1.bf16.msra.mxu0 %v344
      %374 = vmatprep.subr.bf16.mxu0 0
      %375 = vmatpush1.bf16.msra.mxu0 %v343
      %376 = vmatprep.subr.bf16.mxu0 0
      %377 = vmatpush1.bf16.msra.mxu0 %v342
      %378 = vmatprep.subr.bf16.mxu0 0
      %379 = vmatpush1.bf16.msra.mxu0 %v341
      %380 = vmatprep.subr.bf16.mxu0 0
      %381 = vmatpush1.bf16.msra.mxu0 %v340
      %382 = vmatprep.subr.bf16.mxu0 0
      %383 = vmatpush1.bf16.msra.mxu0 %v339
      %384 = vmatprep.subr.bf16.mxu0 0
      %385 = vmatpush1.bf16.msra.mxu0 %v338
      %386 = vmatprep.subr.bf16.mxu0 0
      %387 = vmatpush2.bf16.msra.mxu0 %v353
      %388 = vmatprep.subr.bf16.mxu0 0
      %389 = vmatpush2.bf16.msra.mxu0 %v352
      %390 = vmatprep.subr.bf16.mxu0 0
      %391 = vmatpush2.bf16.msra.mxu0 %v351
      %392 = vmatprep.subr.bf16.mxu0 0
      %393 = vmatpush2.bf16.msra.mxu0 %v350
      %394 = vmatprep.subr.bf16.mxu0 0
      %395 = vmatpush2.bf16.msra.mxu0 %v349
      %396 = vmatprep.subr.bf16.mxu0 0
      %397 = vmatpush2.bf16.msra.mxu0 %v348
      %398 = vmatprep.subr.bf16.mxu0 0
      %399 = vmatpush2.bf16.msra.mxu0 %v347
      %400 = vmatprep.subr.bf16.mxu0 0
      %401 = vmatpush2.bf16.msra.mxu0 %v346
      %402 = vmatprep.mubr.bf16.mxu0 %v234
      %403 = vmatmul.mubr.bf16.gmra.mxu0 %v233
      %v404 = vpop.f32.mrf.mxu0
      %v405 = vadd.f32 %v272, %v404
      %v406 = vpop.f32.mrf.mxu0
      %v407 = vpop.f32.mrf.mxu0
      %v408 = vadd.f32 %v272, %v407
      %v409 = vpop.f32.mrf.mxu0
      %410 = vdwg.mxu0
      %411 = vst [vmem:[%s226] sm:$0xff] %v405
      %412 = vst [vmem:[%s226 + $0x8] sm:$0xff] %v408
      %s413 = smul.u32 2, %s19
      %p414 = scmp.lt.s32.totalorder %s413, 7
      %s415 = scalar_select %p414, %s413, 7
      %p416 = scmp.lt.s32.totalorder %s18, 0
      %s417 = scalar_select %p416, %s18, 0
      %s418 = sadd.s32 %s417, %s415
      %s419 = smul.addr %s418, 8
      %s420 = scalar_lea.vmem %s3, %s419
      // Predicated region
      $region33: #{fwd.1} parent=31 // pred_check
        %p421 = pneg %p124
      $region34: #{fwd.1} parent=31 // pred_check_branch
        %423 = sbr.rel (%p421) target = $region36
      $region35: #{fwd.1} parent=31 // pred_region
        %s424 = smul.u32 2, %s19
      $region36: #{fwd.1} parent=31 // pred_fallthru
        _
    $region32: #{fwd.1} parent=5 // pred_fallthru
      _
    %p425 = scmp.le.s32.totalorder 2, %s9
    // Predicated region
    $region37: #{fwd.1} parent=5 // pred_check
      %p426 = pneg %p425
    $region38: #{fwd.1} parent=5 // pred_check_branch
      %428 = sbr.rel (%p426) target = $region40
    $region39: #{fwd.1} parent=5 // pred_region
      %s429 = ssub.s32 %s9, 2
      // Predicated region
      $region41: #{fwd.1} parent=39 // pred_check
        %p430 = pneg %p130
      $region42: #{fwd.1} parent=39 // pred_check_branch
        %432 = sbr.rel (%p430) target = $region44
      $region43: #{fwd.1} parent=39 // pred_region
        %s433 = smul.u32 2, %s21
        %p434 = scmp.lt.s32.totalorder %s433, 7
        %s435 = scalar_select %p434, %s433, 7
        %p436 = scmp.lt.s32.totalorder %s20, 0
        %s437 = scalar_select %p436, %s20, 0
        %s438 = sadd.s32 %s437, %s435
        %s439 = smul.addr %s438, 8
        %s440 = scalar_lea.vmem %s3, %s439
      $region44: #{fwd.1} parent=39 // pred_fallthru
        _
    $region40: #{fwd.1} parent=5 // pred_fallthru
      _
  $region6: #{fwd.1} parent=0 // loop_footer
    %s13 = sadd.s32 1, %s9
  $region7: #{fwd.1} parent=0 // loop_footer_branch
    %8 = sbr.rel target = $region3
  $region8: #{fwd.1} parent=0 // loop_exit
    _

</llo_original>
